<compile_context>
chip_gen: v5e
topology: v5e:2x2
jax: 0.10.0
libtpu: 0.0.40
codegen_flags: <defaults>
</compile_context>

<pallas_src>
import functools

import jax
import jax.numpy as jnp
from jax.experimental import pallas as pl
from jax.experimental.pallas import tpu as pltpu

EPS = 1e-5
ROW_TILE = 512  # target rows per tile (review: >=512 on v6e, fine on v7x/v5e)


# ------------------------------ small helpers ------------------------------

def _round_up(n, k):
    return (n + k - 1) // k * k


def _row_tiles(m):
    """Row tile (multiple of 128, <= ROW_TILE) and padded row count."""
    m_pad = _round_up(m, 128)
    if m_pad <= ROW_TILE:
        return m_pad, m_pad
    return ROW_TILE, _round_up(m, ROW_TILE)


def _pad_rows(a, m_pad):
    m = a.shape[-2]
    if m == m_pad:
        return a
    pad = [(0, 0)] * a.ndim
    pad[-2] = (0, m_pad - m)
    return jnp.pad(a, pad)


# -------------------- fused conv (tap-accumulate) + stats ------------------

def _conv_prologue(i, t, sum_ref, sq_ref, acc_ref):
    @pl.when(t == 0)
    def _():
        acc_ref[...] = jnp.zeros_like(acc_ref)

    @pl.when((i == 0) & (t == 0))
    def _():
        sum_ref[...] = jnp.zeros_like(sum_ref)
        sq_ref[...] = jnp.zeros_like(sq_ref)


def _conv_epilogue(i, t, y_ref, sum_ref, sq_ref, acc_ref, m_true):
    nt = pl.num_programs(1)
    tm = y_ref.shape[0]

    @pl.when(t == nt - 1)
    def _():
        y = acc_ref[...]
        y_ref[...] = y
        # mask padded rows out of the BatchNorm statistics
        rows = i * tm + jax.lax.broadcasted_iota(jnp.int32, y.shape, 0)
        yv = jnp.where(rows < m_true, y, 0.0)
        sum_ref[...] += jnp.sum(yv, axis=0, keepdims=True)
        sq_ref[...] += jnp.sum(yv * yv, axis=0, keepdims=True)


def _conv_stats_kernel(lhs_ref, w_ref, y_ref, sum_ref, sq_ref, acc_ref, *,
                       m_true):
    i, t = pl.program_id(0), pl.program_id(1)
    _conv_prologue(i, t, sum_ref, sq_ref, acc_ref)
    acc_ref[...] += jnp.dot(lhs_ref[0], w_ref[0],
                            preferred_element_type=jnp.float32)
    _conv_epilogue(i, t, y_ref, sum_ref, sq_ref, acc_ref, m_true)


def _conv_bnrelu_stats_kernel(lhs_ref, w_ref, s_ref, b_ref,
                              y_ref, sum_ref, sq_ref, acc_ref, *, m_true):
    i, t = pl.program_id(0), pl.program_id(1)
    _conv_prologue(i, t, sum_ref, sq_ref, acc_ref)
    # BN1 + ReLU fused onto the LHS tile (f32), then bf16 for the MXU.
    a = jnp.maximum(lhs_ref[0] * s_ref[...] + b_ref[...], 0.0)
    acc_ref[...] += jnp.dot(a.astype(jnp.bfloat16), w_ref[0],
                            preferred_element_type=jnp.float32)
    _conv_epilogue(i, t, y_ref, sum_ref, sq_ref, acc_ref, m_true)


def pallas_conv_stats(taps, w_taps, m_true, tm, in_scale=None, in_shift=None):
    """taps (n_taps, M_pad, Cin) x w_taps (n_taps, Cin, Cout) -> conv output
    y (M_pad, Cout) f32 plus per-channel sum / sum-of-squares over the first
    m_true rows (for BatchNorm), all in one pallas_call."""
    n_taps, m_pad, cin = taps.shape
    cout = w_taps.shape[-1]
    grid = (m_pad // tm, n_taps)

    lhs_spec = pl.BlockSpec((1, tm, cin), lambda i, t: (t, i, 0))
    w_spec = pl.BlockSpec((1, cin, cout), lambda i, t: (t, 0, 0))
    ch_spec = pl.BlockSpec((1, cin), lambda i, t: (0, 0))

    if in_scale is None:
        kernel = functools.partial(_conv_stats_kernel, m_true=m_true)
        in_specs = [lhs_spec, w_spec]
        args = (taps, w_taps)
    else:
        kernel = functools.partial(_conv_bnrelu_stats_kernel, m_true=m_true)
        in_specs = [lhs_spec, w_spec, ch_spec, ch_spec]
        args = (taps, w_taps,
                in_scale.reshape(1, cin), in_shift.reshape(1, cin))

    y, s, sq = pl.pallas_call(
        kernel,
        out_shape=(jax.ShapeDtypeStruct((m_pad, cout), jnp.float32),
                   jax.ShapeDtypeStruct((1, cout), jnp.float32),
                   jax.ShapeDtypeStruct((1, cout), jnp.float32)),
        grid=grid,
        in_specs=in_specs,
        out_specs=(pl.BlockSpec((tm, cout), lambda i, t: (i, 0)),
                   pl.BlockSpec((1, cout), lambda i, t: (0, 0)),
                   pl.BlockSpec((1, cout), lambda i, t: (0, 0))),
        scratch_shapes=[pltpu.VMEM((tm, cout), jnp.float32)],
        compiler_params=pltpu.CompilerParams(
            dimension_semantics=("arbitrary", "arbitrary")),
    )(*args)
    return y, s, sq


# -------------------- fused BN2 + residual(-BN) + ReLU ---------------------

def _bn_add_relu_kernel(y_ref, s_ref, b_ref, r_ref, rs_ref, rb_ref, out_ref):
    p = (y_ref[...] * s_ref[...] + b_ref[...]
         + r_ref[...] * rs_ref[...] + rb_ref[...])
    out_ref[...] = jnp.maximum(p, 0.0)


def _bn_add_relu_pre_kernel(y_ref, s_ref, b_ref, r_ref, rs_ref, rb_ref,
                            pre_ref, out_ref):
    p = (y_ref[...] * s_ref[...] + b_ref[...]
         + r_ref[...] * rs_ref[...] + rb_ref[...])
    pre_ref[...] = p
    out_ref[...] = jnp.maximum(p, 0.0)


def pallas_bn_add_relu(y, scale, shift, res, res_scale, res_shift, tm,
                       want_pre):
    m_pad, c = y.shape
    row = pl.BlockSpec((tm, c), lambda i: (i, 0))
    ch = pl.BlockSpec((1, c), lambda i: (0, 0))
    in_specs = [row, ch, ch, row, ch, ch]
    args = (y, scale.reshape(1, c), shift.reshape(1, c),
            res, res_scale.reshape(1, c), res_shift.reshape(1, c))
    if want_pre:
        kernel = _bn_add_relu_pre_kernel
        out_shape = (jax.ShapeDtypeStruct((m_pad, c), jnp.float32),
                     jax.ShapeDtypeStruct((m_pad, c), jnp.float32))
        out_specs = (row, row)
    else:
        kernel = _bn_add_relu_kernel
        out_shape = jax.ShapeDtypeStruct((m_pad, c), jnp.float32)
        out_specs = row
    return pl.pallas_call(
        kernel, out_shape=out_shape, grid=(m_pad // tm,),
        in_specs=in_specs, out_specs=out_specs,
        compiler_params=pltpu.CompilerParams(
            dimension_semantics=("parallel",)),
    )(*args)


# ------------------------------- JAX glue ----------------------------------

def _conv_taps(img, stride, dtype, pad_value=None):
    """img (N,H,W,C) -> (9, N*Ho*Wo, C) tap-stacked patches of a 3x3 conv with
    padding=1.  pad_value: optional per-channel spatial pad value (else 0)."""
    N, H, W, C = img.shape
    if pad_value is None:
        xp = jnp.pad(img, ((0, 0), (1, 1), (1, 1), (0, 0)))
    else:
        pv = pad_value.reshape(1, 1, 1, C).astype(img.dtype)
        xp = jnp.pad(img - pv, ((0, 0), (1, 1), (1, 1), (0, 0))) + pv
    Ho = (H - 1) // stride + 1
    Wo = (W - 1) // stride + 1
    taps = []
    for kh in range(3):
        for kw in range(3):
            taps.append(
                xp[:, kh:kh + stride * (Ho - 1) + 1:stride,
                      kw:kw + stride * (Wo - 1) + 1:stride, :]
                .reshape(N * Ho * Wo, C))
    return jnp.stack(taps, axis=0).astype(dtype), Ho, Wo


def _w_to_taps(w, dtype):
    """PyTorch (Cout, Cin, Kh, Kw) -> (Kh*Kw, Cin, Cout); tap order kh*Kw+kw."""
    co, ci, kh, kw = w.shape
    return jnp.transpose(w, (2, 3, 1, 0)).reshape(kh * kw, ci, co).astype(dtype)


def _bn_from_sums(s, sq, m_true, gamma, beta):
    mean = s[0] / m_true
    # single-pass variance (matches batch stats); clamp tiny negative
    # cancellation so sqrt never sees a negative value.
    var = jnp.maximum(sq[0] / m_true - mean * mean, 0.0)
    scale = gamma / jnp.sqrt(var + EPS)
    shift = beta - mean * scale
    return scale, shift


def resblock_forward(x_nchw, params, return_before_act):
    downsample = params["downsample"]
    x = jnp.transpose(x_nchw, (0, 2, 3, 1)).astype(jnp.float32)  # NHWC, once
    N, H, W, Cin = x.shape
    stride1 = 2 if downsample else 1
    Ho = (H - 1) // stride1 + 1
    Wo = (W - 1) // stride1 + 1
    M = N * Ho * Wo
    tm, m_pad = _row_tiles(M)

    # ---- conv1 (3x3, stride1) + batch stats: one pallas_call ----
    taps1, _, _ = _conv_taps(x, stride1, jnp.bfloat16)
    taps1 = _pad_rows(taps1, m_pad)
    w1 = _w_to_taps(params["w1"], jnp.bfloat16)
    y1, s1sum, s1sq = pallas_conv_stats(taps1, w1, M, tm)
    scale1, shift1 = _bn_from_sums(s1sum, s1sq, M, params["g1"], params["b1"])

    # ---- conv2 (3x3, stride 1) with BN1+ReLU fused onto the LHS + stats ----
    y1_img = y1[:M].reshape(N, Ho, Wo, -1)
    Cout = y1_img.shape[-1]
    # pad value that BN1+ReLU maps exactly to 0 (emulates zero-padding of h1)
    pad1 = jnp.where(scale1 != 0, -shift1 / scale1, 0.0)
    taps2, _, _ = _conv_taps(y1_img, 1, jnp.float32, pad_value=pad1)
    taps2 = _pad_rows(taps2, m_pad)
    w2 = _w_to_taps(params["w2"], jnp.bfloat16)
    y2, s2sum, s2sq = pallas_conv_stats(taps2, w2, M, tm,
                                        in_scale=scale1, in_shift=shift1)
    scale2, shift2 = _bn_from_sums(s2sum, s2sq, M, params["g2"], params["b2"])

    # ---- residual branch ----
    if downsample:
        xs = x[:, ::2, ::2, :].reshape(M, Cin).astype(jnp.bfloat16)
        tapsd = _pad_rows(xs[None], m_pad)               # 1x1 conv = one tap
        wd = _w_to_taps(params["wd"], jnp.bfloat16)
        yd, sdsum, sdsq = pallas_conv_stats(tapsd, wd, M, tm)
        res_scale, res_shift = _bn_from_sums(sdsum, sdsq, M,
                                             params["gd"], params["bd"])
        res = yd
    else:
        res = _pad_rows(x.reshape(M, Cin), m_pad)
        res_scale = jnp.ones((Cout,), jnp.float32)
        res_shift = jnp.zeros((Cout,), jnp.float32)

    # ---- BN2 + residual(-BN) + ReLU: one fused element-wise pass ----
    outs = pallas_bn_add_relu(y2, scale2, shift2, res, res_scale, res_shift,
                              tm, want_pre=return_before_act)

    def to_nchw(a):
        return jnp.transpose(a[:M].reshape(N, Ho, Wo, Cout), (0, 3, 1, 2))

    if return_before_act:
        pre, out = outs
        return to_nchw(pre), to_nchw(out)
    return to_nchw(outs)


# --------------------------- reference & params ----------------------------

def ref_forward(x, p, return_before_act, conv_dtype=jnp.float32):
    # conv_dtype=bfloat16 mirrors the kernel's MXU input precision
    # (bf16 operands, f32 accumulation); everything else is f32.
    def conv(x, w, stride, pad):
        return jax.lax.conv_general_dilated(
            x.astype(conv_dtype), w.astype(conv_dtype), (stride, stride),
            [(pad, pad), (pad, pad)],
            dimension_numbers=("NCHW", "OIHW", "NCHW"),
            preferred_element_type=jnp.float32)

    def bn(y, g, b):
        mean = jnp.mean(y, axis=(0, 2, 3), keepdims=True)
        var = jnp.mean((y - mean) ** 2, axis=(0, 2, 3), keepdims=True)
        yn = (y - mean) / jnp.sqrt(var + EPS)
        return yn * g[None, :, None, None] + b[None, :, None, None]

    downsample = p["downsample"]
    stride1 = 2 if downsample else 1
    h = jax.nn.relu(bn(conv(x, p["w1"], stride1, 1), p["g1"], p["b1"]))
    pout = bn(conv(h, p["w2"], 1, 1), p["g2"], p["b2"])
    residual = x
    if downsample:
        residual = bn(conv(x, p["wd"], 2, 0), p["gd"], p["bd"])
    pout = pout + residual
    out = jax.nn.relu(pout)
    return (pout, out) if return_before_act else out


def init_resblock_params(key, in_channels, out_channels):
    downsample = in_channels != out_channels
    ks = jax.random.split(key, 9)
    p = {
        "downsample": downsample,
        "w1": 0.1 * jax.random.normal(ks[0], (out_channels, in_channels, 3, 3), jnp.float32),
        "g1": 1.0 + 0.1 * jax.random.normal(ks[1], (out_channels,), jnp.float32),
        "b1": 0.1 * jax.random.normal(ks[2], (out_channels,), jnp.float32),
        "w2": 0.1 * jax.random.normal(ks[3], (out_channels, out_channels, 3, 3), jnp.float32),
        "g2": 1.0 + 0.1 * jax.random.normal(ks[4], (out_channels,), jnp.float32),
        "b2": 0.1 * jax.random.normal(ks[5], (out_channels,), jnp.float32),
    }
    if downsample:
        p["wd"] = 0.1 * jax.random.normal(ks[6], (out_channels, in_channels, 1, 1), jnp.float32)
        p["gd"] = 1.0 + 0.1 * jax.random.normal(ks[7], (out_channels,), jnp.float32)
        p["bd"] = 0.1 * jax.random.normal(ks[8], (out_channels,), jnp.float32)
    return p


if __name__ == "__main__":
    key = jax.random.PRNGKey(0)
    kx, kp1, kp2 = jax.random.split(key, 3)
    x = jax.random.normal(kx, (2, 4, 16, 16), jnp.float32)  # NCHW, like PyTorch

    # Kernel uses bf16 MXU operands with f32 accumulation; validate against a
    # reference with matching conv input precision.
    RTOL = ATOL = 5e-3

    # Case 1: downsample (in_channels != out_channels), return_before_act=True
    params_ds = init_resblock_params(kp1, 4, 8)
    pre, out = resblock_forward(x, params_ds, return_before_act=True)
    jax.block_until_ready((pre, out))
    pre_r, out_r = ref_forward(x, params_ds, True, conv_dtype=jnp.bfloat16)
    assert pre.shape == (2, 8, 8, 8) and out.shape == (2, 8, 8, 8)
    assert jnp.allclose(pre, pre_r, rtol=RTOL, atol=ATOL)
    assert jnp.allclose(out, out_r, rtol=RTOL, atol=ATOL)

    # Case 2: identity shortcut (in_channels == out_channels), return_before_act=False
    params_id = init_resblock_params(kp2, 4, 4)
    out2 = resblock_forward(x, params_id, return_before_act=False)
    jax.block_until_ready(out2)
    out2_r = ref_forward(x, params_id, False, conv_dtype=jnp.bfloat16)
    assert out2.shape == (2, 4, 16, 16)
    assert jnp.allclose(out2, out2_r, rtol=RTOL, atol=ATOL)

    print("KERNEL_OK")
</pallas_src>

<mosaic_0001>
module attributes {stable_mosaic.version = 11 : i64} {
  func.func @_conv_stats_kernel(%arg0: i32, %arg1: i32, %arg2: memref<1x128x4xbf16, #tpu.memory_space<vmem>>, %arg3: memref<1x4x8xbf16, #tpu.memory_space<vmem>>, %arg4: memref<128x8xf32, #tpu.memory_space<vmem>>, %arg5: memref<1x8xf32, #tpu.memory_space<vmem>>, %arg6: memref<1x8xf32, #tpu.memory_space<vmem>>, %arg7: memref<128x8xf32, #tpu.memory_space<vmem>>) attributes {dimension_semantics = [#tpu.dimension_semantics<arbitrary>, #tpu.dimension_semantics<arbitrary>], iteration_bounds = array<i64: 1, 9>, scalar_prefetch = 0 : i64, scratch_operands = 1 : i64, tpu.core_type = #tpu.core_type<tc>, window_params = [{transform_indices = @transform_0, window_bounds = array<i64: 1, 128, 4>}, {transform_indices = @transform_1, window_bounds = array<i64: 1, 4, 8>}, {transform_indices = @transform_2, window_bounds = array<i64: 128, 8>}, {pipeline_mode = #tpu.pipeline_mode<synchronous>, transform_indices = @transform_3, window_bounds = array<i64: 1, 8>}, {pipeline_mode = #tpu.pipeline_mode<synchronous>, transform_indices = @transform_4, window_bounds = array<i64: 1, 8>}]} {
    %c0_i32 = arith.constant 0 : i32
    %0 = arith.cmpi eq, %arg1, %c0_i32 : i32
    %1 = arith.extui %0 : i1 to i32
    %c0_i32_0 = arith.constant 0 : i32
    %2 = arith.cmpi ne, %1, %c0_i32_0 : i32
    scf.if %2 {
      %cst_14 = arith.constant 0.000000e+00 : f32
      %19 = vector.broadcast %cst_14 : f32 to vector<128x8xf32>
      %c0_15 = arith.constant 0 : index
      %c0_16 = arith.constant 0 : index
      %20 = vector.load %arg7[%c0_15, %c0_16] : memref<128x8xf32, #tpu.memory_space<vmem>>, vector<128x8xf32>
      tpu.vector_store %arg7[%c0_15, %c0_16], %19 {strides = array<i32>} : memref<128x8xf32, #tpu.memory_space<vmem>>, vector<128x8xf32>,
    } else {
    }
    %c0_i32_1 = arith.constant 0 : i32
    %3 = arith.cmpi eq, %arg0, %c0_i32_1 : i32
    %c0_i32_2 = arith.constant 0 : i32
    %4 = arith.cmpi eq, %arg1, %c0_i32_2 : i32
    %5 = arith.andi %3, %4 : i1
    %6 = arith.extui %5 : i1 to i32
    %c0_i32_3 = arith.constant 0 : i32
    %7 = arith.cmpi ne, %6, %c0_i32_3 : i32
    scf.if %7 {
      %cst_14 = arith.constant 0.000000e+00 : f32
      %19 = vector.broadcast %cst_14 : f32 to vector<1x8xf32>
      %c0_15 = arith.constant 0 : index
      %c0_16 = arith.constant 0 : index
      %20 = vector.load %arg5[%c0_15, %c0_16] : memref<1x8xf32, #tpu.memory_space<vmem>>, vector<1x8xf32>
      tpu.vector_store %arg5[%c0_15, %c0_16], %19 {strides = array<i32>} : memref<1x8xf32, #tpu.memory_space<vmem>>, vector<1x8xf32>,
      %cst_17 = arith.constant 0.000000e+00 : f32
      %21 = vector.broadcast %cst_17 : f32 to vector<1x8xf32>
      %c0_18 = arith.constant 0 : index
      %c0_19 = arith.constant 0 : index
      %22 = vector.load %arg6[%c0_18, %c0_19] : memref<1x8xf32, #tpu.memory_space<vmem>>, vector<1x8xf32>
      tpu.vector_store %arg6[%c0_18, %c0_19], %21 {strides = array<i32>} : memref<1x8xf32, #tpu.memory_space<vmem>>, vector<1x8xf32>,
    } else {
    }
    %c0 = arith.constant 0 : index
    %c0_4 = arith.constant 0 : index
    %8 = vector.load %arg7[%c0, %c0_4] : memref<128x8xf32, #tpu.memory_space<vmem>>, vector<128x8xf32>
    %c0_5 = arith.constant 0 : index
    %c0_6 = arith.constant 0 : index
    %c0_7 = arith.constant 0 : index
    %9 = vector.load %arg2[%c0_5, %c0_6, %c0_7] : memref<1x128x4xbf16, #tpu.memory_space<vmem>>, vector<1x128x4xbf16>
    %10 = vector.shape_cast %9 : vector<1x128x4xbf16> to vector<128x4xbf16>
    %c0_8 = arith.constant 0 : index
    %c0_9 = arith.constant 0 : index
    %c0_10 = arith.constant 0 : index
    %11 = vector.load %arg3[%c0_8, %c0_9, %c0_10] : memref<1x4x8xbf16, #tpu.memory_space<vmem>>, vector<1x4x8xbf16>
    %12 = vector.shape_cast %11 : vector<1x4x8xbf16> to vector<4x8xbf16>
    %cst = arith.constant dense<0.000000e+00> : vector<128x8xf32>
    %13 = tpu.matmul %10, %12, %cst {dimension_numbers = #tpu.dot_dimension_numbers<[1], [0], [0], [1], [0, 0, 1, 1], [], []>} : vector<128x4xbf16>, vector<4x8xbf16>, vector<128x8xf32> -> vector<128x8xf32>
    %14 = arith.addf %8, %13 : vector<128x8xf32>
    %c0_11 = arith.constant 0 : index
    %c0_12 = arith.constant 0 : index
    %15 = vector.load %arg7[%c0_11, %c0_12] : memref<128x8xf32, #tpu.memory_space<vmem>>, vector<128x8xf32>
    tpu.vector_store %arg7[%c0_11, %c0_12], %14 {strides = array<i32>} : memref<128x8xf32, #tpu.memory_space<vmem>>, vector<128x8xf32>,
    %c8_i32 = arith.constant 8 : i32
    %16 = arith.cmpi eq, %arg1, %c8_i32 : i32
    %17 = arith.extui %16 : i1 to i32
    %c0_i32_13 = arith.constant 0 : i32
    %18 = arith.cmpi ne, %17, %c0_i32_13 : i32
    scf.if %18 {
      %c0_14 = arith.constant 0 : index
      %c0_15 = arith.constant 0 : index
      %19 = vector.load %arg7[%c0_14, %c0_15] : memref<128x8xf32, #tpu.memory_space<vmem>>, vector<128x8xf32>
      %c0_16 = arith.constant 0 : index
      %c0_17 = arith.constant 0 : index
      %20 = vector.load %arg4[%c0_16, %c0_17] : memref<128x8xf32, #tpu.memory_space<vmem>>, vector<128x8xf32>
      tpu.vector_store %arg4[%c0_16, %c0_17], %19 {strides = array<i32>} : memref<128x8xf32, #tpu.memory_space<vmem>>, vector<128x8xf32>,
      %c128_i32 = arith.constant 128 : i32
      %21 = arith.muli %arg0, %c128_i32 : i32
      %22 = tpu.iota {dimensions = array<i32: 0>} : vector<128x8xi32>
      %23 = vector.broadcast %21 : i32 to vector<128x8xi32>
      %24 = arith.addi %23, %22 : vector<128x8xi32>
      %c128_i32_18 = arith.constant 128 : i32
      %25 = vector.broadcast %c128_i32_18 : i32 to vector<128x8xi32>
      %26 = arith.cmpi slt, %24, %25 : vector<128x8xi32>
      %cst_19 = arith.constant 0.000000e+00 : f32
      %27 = vector.broadcast %cst_19 : f32 to vector<128x8xf32>
      %28 = arith.select %26, %19, %27 : vector<128x8xi1>, vector<128x8xf32>
      %c0_20 = arith.constant 0 : index
      %c0_21 = arith.constant 0 : index
      %29 = vector.load %arg5[%c0_20, %c0_21] : memref<1x8xf32, #tpu.memory_space<vmem>>, vector<1x8xf32>
      %cst_22 = arith.constant dense<0.000000e+00> : vector<8xf32>
      %30 = vector.multi_reduction <add>, %28, %cst_22 [0] : vector<128x8xf32> to vector<8xf32>
      %31 = vector.shape_cast %30 : vector<8xf32> to vector<1x8xf32>
      %32 = arith.addf %29, %31 : vector<1x8xf32>
      %c0_23 = arith.constant 0 : index
      %c0_24 = arith.constant 0 : index
      %33 = vector.load %arg5[%c0_23, %c0_24] : memref<1x8xf32, #tpu.memory_space<vmem>>, vector<1x8xf32>
      tpu.vector_store %arg5[%c0_23, %c0_24], %32 {strides = array<i32>} : memref<1x8xf32, #tpu.memory_space<vmem>>, vector<1x8xf32>,
      %c0_25 = arith.constant 0 : index
      %c0_26 = arith.constant 0 : index
      %34 = vector.load %arg6[%c0_25, %c0_26] : memref<1x8xf32, #tpu.memory_space<vmem>>, vector<1x8xf32>
      %35 = arith.mulf %28, %28 : vector<128x8xf32>
      %cst_27 = arith.constant dense<0.000000e+00> : vector<8xf32>
      %36 = vector.multi_reduction <add>, %35, %cst_27 [0] : vector<128x8xf32> to vector<8xf32>
      %37 = vector.shape_cast %36 : vector<8xf32> to vector<1x8xf32>
      %38 = arith.addf %34, %37 : vector<1x8xf32>
      %c0_28 = arith.constant 0 : index
      %c0_29 = arith.constant 0 : index
      %39 = vector.load %arg6[%c0_28, %c0_29] : memref<1x8xf32, #tpu.memory_space<vmem>>, vector<1x8xf32>
      tpu.vector_store %arg6[%c0_28, %c0_29], %38 {strides = array<i32>} : memref<1x8xf32, #tpu.memory_space<vmem>>, vector<1x8xf32>,
    } else {
    }
    return
  }
  func.func @transform_0(%arg0: i32, %arg1: i32) -> (i32, i32, i32) {
    %c0_i32 = arith.constant 0 : i32
    %c0_i32_0 = arith.constant 0 : i32
    return %arg1, %arg0, %c0_i32 : i32, i32, i32
  }
  func.func @transform_1(%arg0: i32, %arg1: i32) -> (i32, i32, i32) {
    %c0_i32 = arith.constant 0 : i32
    %c0_i32_0 = arith.constant 0 : i32
    %c0_i32_1 = arith.constant 0 : i32
    return %arg1, %c0_i32, %c0_i32_0 : i32, i32, i32
  }
  func.func @transform_2(%arg0: i32, %arg1: i32) -> (i32, i32) {
    %c0_i32 = arith.constant 0 : i32
    %c0_i32_0 = arith.constant 0 : i32
    return %arg0, %c0_i32 : i32, i32
  }
  func.func @transform_3(%arg0: i32, %arg1: i32) -> (i32, i32) {
    %c0_i32 = arith.constant 0 : i32
    %c0_i32_0 = arith.constant 0 : i32
    %c0_i32_1 = arith.constant 0 : i32
    return %c0_i32, %c0_i32_0 : i32, i32
  }
  func.func @transform_4(%arg0: i32, %arg1: i32) -> (i32, i32) {
    %c0_i32 = arith.constant 0 : i32
    %c0_i32_0 = arith.constant 0 : i32
    %c0_i32_1 = arith.constant 0 : i32
    return %c0_i32, %c0_i32_0 : i32, i32
  }
}

</mosaic_0001>

<llo_original>
// kernel: tpu_custom_call.1
$region0: #{tpu_custom_call.1}
  #allocation0 [shape = 'u32[]', space=smem, size = 0x4, offset = 0x4, fixed_abs, tag = 'smem constant byte address 0x4 - core index']
  #allocation1 [shape = 'u32[72,128]{1,0:T(1,128)}', space=vmem, size = 0x9000, scoped, tag = 'internal scratch']
  #allocation2 [shape = 'f32[128,8]{1,0:T(8,128)}', space=vmem, size = 0x10000, scoped, tag = 'scratch operand']
  %s0 = inlined_call_operand.vmem [shape: bf16[9,128,4], index: 0, kind: input, shape index: {}]
  %s1 = inlined_call_operand.vmem [shape: bf16[9,4,8], index: 1, kind: input, shape index: {}]
  %s2 = inlined_call_operand.vmem [shape: f32[128,8], index: 2, kind: output, shape index: {0}]
  %s3 = inlined_call_operand.hbm [shape: f32[1,8], index: 3, kind: output, shape index: {1}]
  %s4 = inlined_call_operand.hbm [shape: f32[1,8], index: 4, kind: output, shape index: {2}]
  %5 = xla_tuple %s2, %s3, %s4
  %s6 = sld [smem:[#allocation0]]
  $region69: #{tpu_custom_call.1} parent=0
    _
  %s8 = ssub.s32 1, %s6
  %s9 = scalar_select 0, %s8, %s6
  $region1: #{tpu_custom_call.1} parent=0
    #allocation3 [shape = 'u8[512]{0}', space=vmem, size = 0x400, scoped, tag = 'output window, operand 1, single buffered']
    #allocation4 [shape = 's32[2]{0}', space=sflag, size = 0x8, scoped, tag = 'scoped memory for tpu_custom_call.1']
    #allocation5 [shape = 'u8[512]{0}', space=vmem, size = 0x400, scoped, tag = 'output window, operand 2, single buffered']
    #allocation6 [shape = 's32[1]{0}', space=sflag, size = 0x4, scoped, tag = 'scoped memory for tpu_custom_call.1']
    %10 = vsyncpa [#allocation4], 0
    %11 = vsyncpa [#allocation6], 0
    loop: start=0, step=1, limit=11
    $region2: #{tpu_custom_call.1} parent=1 // loop_pre_header
      _
    $region3: #{tpu_custom_call.1} parent=1 // loop_header
      %s13 = sphi 0, %s17
      %p14 = scmp.ge.s32.totalorder %s13, 11
      %s20 = sphi 0, %s32
      %s21 = sphi 0, %s28
      %s22 = sphi 0, %s20
      %s23 = sphi 0, %s21
      %s24 = sphi 0, %s22
      %s25 = sphi 0, %s23
      %s37 = sphi 0, %s39
      %s40 = sphi 0, %s37
      %s41 = sphi 0, %s40
      %s57 = sphi 0, %s41
      %s63 = sphi 0, %s65
      %s66 = sphi 0, %s63
      %s67 = sphi 0, %s66
      %s83 = sphi 0, %s67
      %s89 = sphi 0, %s91
      %s92 = sphi 0, %s89
      %s93 = sphi 0, %s92
      %s109 = sphi 0, %s93
      %s113 = sphi 0, %s113
      %s115 = sphi 0, %s113
      %s116 = sphi 0, %s115
      %s130 = sphi 0, %s116
      %s134 = sphi 0, %s134
      %s136 = sphi 0, %s134
      %s137 = sphi 0, %s136
      %s151 = sphi 0, %s137
    $region4: #{tpu_custom_call.1} parent=1 // loop_header_branch
      %16 = sbr.rel (%p14) target = $region8
    $region5: #{tpu_custom_call.1} parent=1 // loop_body
      %s18 = ssub.s32 %s13, 1
      %s19 = ssub.s32 %s13, 2
      %s26 = sadd.s32 1, %s21
      %p27 = scmp.ge.s32.totalorder %s26, 9
      %s28 = scalar_select %p27, 0, %s26
      %s29 = sadd.s32 1, %s20
      %s30 = scalar_select %p27, %s29, %s20
      %p31 = scmp.ge.s32.totalorder %s30, 1
      %s32 = scalar_select %p31, 0, %s30
      %s33 = ssub.s32 %s21, %s28
      %s34 = ssub.s32 %s20, %s32
      %s35 = sor.u32 %s33, %s34
      %p36 = scmp.eq.s32.totalorder %s35, 0
      %s38 = sadd.s32 %s37, 1
      %s39 = scalar_select %p36, %s37, %s38
      %p42 = pneg %p36
      %p43 = scmp.eq.s32.totalorder %s13, 8
      %p44 = por %p42, %p43
      %p45 = scmp.ne.s32.totalorder %s37, %s40
      %p46 = scmp.eq.s32.totalorder %s13, 0
      %p47 = por %p45, %p46
      %p48 = scmp.ne.s32.totalorder %s37, %s40
      %p49 = scmp.eq.s32.totalorder %s18, 8
      %p50 = por %p48, %p49
      %p51 = scmp.ne.s32.totalorder %s40, %s41
      %p52 = scmp.eq.s32.totalorder %s18, 0
      %p53 = por %p51, %p52
      %p54 = scmp.ne.s32.totalorder %s40, %s41
      %p55 = scmp.eq.s32.totalorder %s19, 8
      %p56 = por %p54, %p55
      %p58 = scmp.ne.s32.totalorder %s41, %s57
      %p59 = scmp.eq.s32.totalorder %s19, 0
      %p60 = por %p58, %p59
      %s61 = ssub.s32 %s21, %s28
      %p62 = scmp.eq.s32.totalorder %s61, 0
      %s64 = sadd.s32 %s63, 1
      %s65 = scalar_select %p62, %s63, %s64
      %p68 = pneg %p62
      %p69 = scmp.eq.s32.totalorder %s13, 8
      %p70 = por %p68, %p69
      %p71 = scmp.ne.s32.totalorder %s63, %s66
      %p72 = scmp.eq.s32.totalorder %s13, 0
      %p73 = por %p71, %p72
      %p74 = scmp.ne.s32.totalorder %s63, %s66
      %p75 = scmp.eq.s32.totalorder %s18, 8
      %p76 = por %p74, %p75
      %p77 = scmp.ne.s32.totalorder %s66, %s67
      %p78 = scmp.eq.s32.totalorder %s18, 0
      %p79 = por %p77, %p78
      %p80 = scmp.ne.s32.totalorder %s66, %s67
      %p81 = scmp.eq.s32.totalorder %s19, 8
      %p82 = por %p80, %p81
      %p84 = scmp.ne.s32.totalorder %s67, %s83
      %p85 = scmp.eq.s32.totalorder %s19, 0
      %p86 = por %p84, %p85
      %s87 = ssub.s32 %s20, %s32
      %p88 = scmp.eq.s32.totalorder %s87, 0
      %s90 = sadd.s32 %s89, 1
      %s91 = scalar_select %p88, %s89, %s90
      %p94 = pneg %p88
      %p95 = scmp.eq.s32.totalorder %s13, 8
      %p96 = por %p94, %p95
      %p97 = scmp.ne.s32.totalorder %s89, %s92
      %p98 = scmp.eq.s32.totalorder %s13, 0
      %p99 = por %p97, %p98
      %p100 = scmp.ne.s32.totalorder %s89, %s92
      %p101 = scmp.eq.s32.totalorder %s18, 8
      %p102 = por %p100, %p101
      %p103 = scmp.ne.s32.totalorder %s92, %s93
      %p104 = scmp.eq.s32.totalorder %s18, 0
      %p105 = por %p103, %p104
      %p106 = scmp.ne.s32.totalorder %s92, %s93
      %p107 = scmp.eq.s32.totalorder %s19, 8
      %p108 = por %p106, %p107
      %p110 = scmp.ne.s32.totalorder %s93, %s109
      %p111 = scmp.eq.s32.totalorder %s19, 0
      %p112 = por %p110, %p111
      %s114 = sadd.s32 %s113, 1
      %p117 = scmp.eq.s32.totalorder %s13, 8
      %p118 = scmp.ne.s32.totalorder %s113, %s115
      %p119 = scmp.eq.s32.totalorder %s13, 0
      %p120 = por %p118, %p119
      %p121 = scmp.ne.s32.totalorder %s113, %s115
      %p122 = scmp.eq.s32.totalorder %s18, 8
      %p123 = por %p121, %p122
      %p124 = scmp.ne.s32.totalorder %s115, %s116
      %p125 = scmp.eq.s32.totalorder %s18, 0
      %p126 = por %p124, %p125
      %p127 = scmp.ne.s32.totalorder %s115, %s116
      %p128 = scmp.eq.s32.totalorder %s19, 8
      %p129 = por %p127, %p128
      %p131 = scmp.ne.s32.totalorder %s116, %s130
      %p132 = scmp.eq.s32.totalorder %s19, 0
      %p133 = por %p131, %p132
      %s135 = sadd.s32 %s134, 1
      %p138 = scmp.eq.s32.totalorder %s13, 8
      %p139 = scmp.ne.s32.totalorder %s134, %s136
      %p140 = scmp.eq.s32.totalorder %s13, 0
      %p141 = por %p139, %p140
      %p142 = scmp.ne.s32.totalorder %s134, %s136
      %p143 = scmp.eq.s32.totalorder %s18, 8
      %p144 = por %p142, %p143
      %p145 = scmp.ne.s32.totalorder %s136, %s137
      %p146 = scmp.eq.s32.totalorder %s18, 0
      %p147 = por %p145, %p146
      %p148 = scmp.ne.s32.totalorder %s136, %s137
      %p149 = scmp.eq.s32.totalorder %s19, 8
      %p150 = por %p148, %p149
      %p152 = scmp.ne.s32.totalorder %s137, %s151
      %p153 = scmp.eq.s32.totalorder %s19, 0
      %p154 = por %p152, %p153
      %p155 = scmp.le.s32.totalorder 1, %s13
      %p156 = scmp.lt.s32.totalorder %s13, 10
      %p157 = pnand %p155, %p156
      %p158 = pneg %p157
      // Predicated region
      $region9: #{tpu_custom_call.1} parent=5 // pred_check
        _
      $region10: #{tpu_custom_call.1} parent=5 // pred_check_branch
        %160 = sbr.rel (%p157) target = $region12
      $region11: #{tpu_custom_call.1} parent=5 // pred_region
        %s161 = ssub.s32 %s13, 1
      $region12: #{tpu_custom_call.1} parent=5 // pred_fallthru
        _
      %p162 = scmp.lt.s32.totalorder %s13, 9
      // Predicated region
      $region13: #{tpu_custom_call.1} parent=5 // pred_check
        %p163 = pneg %p162
      $region14: #{tpu_custom_call.1} parent=5 // pred_check_branch
        %165 = sbr.rel (%p163) target = $region16
      $region15: #{tpu_custom_call.1} parent=5 // pred_region
        // Predicated region
        $region17: #{tpu_custom_call.1} parent=15 // pred_check
          %p166 = pneg %p47
        $region18: #{tpu_custom_call.1} parent=15 // pred_check_branch
          %168 = sbr.rel (%p166) target = $region20
        $region19: #{tpu_custom_call.1} parent=15 // pred_region
          %s169 = smul.u32 16, %s20
          %p170 = scmp.lt.s32.totalorder %s21, 8
          %s171 = scalar_select %p170, %s21, 8
          %p172 = scmp.lt.s32.totalorder %s169, 15
          %s173 = scalar_select %p172, %s169, 15
          %s174 = smul.addr %s171, 16
          %s175 = sadd.s32 %s173, %s174
          %s176 = smul.addr %s175, 4
          %s177 = scalar_lea.vmem %s0, %s176
          %s178 = smul.u32 16, %s20
        $region20: #{tpu_custom_call.1} parent=15 // pred_fallthru
          _
        // Predicated region
        $region21: #{tpu_custom_call.1} parent=15 // pred_check
          %p179 = pneg %p73
        $region22: #{tpu_custom_call.1} parent=15 // pred_check_branch
          %181 = sbr.rel (%p179) target = $region24
        $region23: #{tpu_custom_call.1} parent=15 // pred_region
          %p182 = scmp.lt.s32.totalorder %s21, 8
          %s183 = scalar_select %p182, %s21, 8
          %s184 = smul.addr %s183, 2
          %s185 = scalar_lea.vmem %s1, %s184
        $region24: #{tpu_custom_call.1} parent=15 // pred_fallthru
          _
      $region16: #{tpu_custom_call.1} parent=5 // pred_fallthru
        _
      %p186 = scmp.le.s32.totalorder 1, %s13
      %p187 = scmp.lt.s32.totalorder %s13, 10
      %p188 = pnand %p186, %p187
      %p189 = pneg %p188
      // Predicated region
      $region25: #{tpu_custom_call.1} parent=5 // pred_check
        _
      $region26: #{tpu_custom_call.1} parent=5 // pred_check_branch
        %191 = sbr.rel (%p188) target = $region28
      $region27: #{tpu_custom_call.1} parent=5 // pred_region
        %s192 = ssub.s32 %s13, 1
        %s193 = smul.u32 16, %s22
        %p194 = scmp.lt.s32.totalorder %s23, 8
        %s195 = scalar_select %p194, %s23, 8
        %p196 = scmp.lt.s32.totalorder %s193, 15
        %s197 = scalar_select %p196, %s193, 15
        %s198 = smul.addr %s195, 16
        %s199 = sadd.s32 %s197, %s198
        %s200 = smul.addr %s199, 4
        %s201 = scalar_lea.vmem %s0, %s200
        %p202 = pneg %p53
        %p203 = pneg %p50
        %p204 = scmp.lt.s32.totalorder %s23, 8
        %s205 = scalar_select %p204, %s23, 8
        %s206 = smul.addr %s205, 2
        %s207 = scalar_lea.vmem %s1, %s206
        %p208 = pneg %p79
        %p209 = pneg %p76
        %p210 = pneg %p105
        %p211 = pneg %p102
        %s212 = smul.u32 16, %s22
        %p213 = scmp.lt.s32.totalorder %s212, 15
        %s214 = scalar_select %p213, %s212, 15
        %s215 = smul.addr %s214, 8
        %s216 = scalar_lea.vmem %s2, %s215
        %p217 = pneg %p126
        %p218 = pneg %p123
        %p219 = pneg %p147
        %p220 = pneg %p144
        %s221 = smul.u32 16, %s22
        %p222 = scmp.lt.s32.totalorder %s23, 8
        %s223 = scalar_select %p222, %s23, 8
        %p224 = scmp.lt.s32.totalorder %s221, 15
        %s225 = scalar_select %p224, %s221, 15
        %s226 = smul.addr %s223, 16
        %s227 = sadd.s32 %s225, %s226
        %s228 = smul.addr %s227, 4
        %s229 = scalar_lea.vmem %s0, %s228
        %s230 = smul.u32 16, %s22
        %p231 = scmp.lt.s32.totalorder %s23, 8
        %s232 = scalar_select %p231, %s23, 8
        %s233 = smul.addr %s232, 2
        %s234 = scalar_lea.vmem %s1, %s233
        %s235 = smul.u32 16, %s22
        %p236 = scmp.lt.s32.totalorder %s235, 15
        %s237 = scalar_select %p236, %s235, 15
        %s238 = smul.addr %s237, 8
        %s239 = scalar_lea.vmem %s2, %s238
        %s240 = smul.u32 16, %s22
        %p242 = scmp.eq.s32.totalorder %s23, 0
        // Predicated region
        $region29: #{tpu_custom_call.1} parent=27 // pred_check
          %p243 = pneg %p242
        $region30: #{tpu_custom_call.1} parent=27 // pred_check_branch
          %245 = sbr.rel (%p243) target = $region32
        $region31: #{tpu_custom_call.1} parent=27 // pred_region
          %vm246 = vcmask 64512
          %247 = vst.msk [vmem:[#allocation2] sm:$0xff] %vm246, 0.0
          %248 = vst.msk [vmem:[#allocation2 + $0x8] sm:$0xff] %vm246, 0.0
          %249 = vst.msk [vmem:[#allocation2 + $0x10] sm:$0xff] %vm246, 0.0
          %250 = vst.msk [vmem:[#allocation2 + $0x18] sm:$0xff] %vm246, 0.0
          %251 = vst.msk [vmem:[#allocation2 + $0x20] sm:$0xff] %vm246, 0.0
          %252 = vst.msk [vmem:[#allocation2 + $0x28] sm:$0xff] %vm246, 0.0
          %253 = vst.msk [vmem:[#allocation2 + $0x30] sm:$0xff] %vm246, 0.0
          %254 = vst.msk [vmem:[#allocation2 + $0x38] sm:$0xff] %vm246, 0.0
          %255 = vst.msk [vmem:[#allocation2 + $0x40] sm:$0xff] %vm246, 0.0
          %256 = vst.msk [vmem:[#allocation2 + $0x48] sm:$0xff] %vm246, 0.0
          %257 = vst.msk [vmem:[#allocation2 + $0x50] sm:$0xff] %vm246, 0.0
          %258 = vst.msk [vmem:[#allocation2 + $0x58] sm:$0xff] %vm246, 0.0
          %259 = vst.msk [vmem:[#allocation2 + $0x60] sm:$0xff] %vm246, 0.0
          %260 = vst.msk [vmem:[#allocation2 + $0x68] sm:$0xff] %vm246, 0.0
          %261 = vst.msk [vmem:[#allocation2 + $0x70] sm:$0xff] %vm246, 0.0
          %262 = vst.msk [vmem:[#allocation2 + $0x78] sm:$0xff] %vm246, 0.0
        $region32: #{tpu_custom_call.1} parent=27 // pred_fallthru
          _
        %p263 = scmp.eq.s32.totalorder %s22, 0
        %p264 = pnand %p263, %p242
        %p265 = pneg %p264
        // Predicated region
        $region33: #{tpu_custom_call.1} parent=27 // pred_check
          _
        $region34: #{tpu_custom_call.1} parent=27 // pred_check_branch
          %267 = sbr.rel (%p264) target = $region36
        $region35: #{tpu_custom_call.1} parent=27 // pred_region
          %vm268 = vcmask 57344
          %269 = vst.msk [vmem:[#allocation3] sm:$0x1] %vm268, 0.0
          %270 = vst.msk [vmem:[#allocation5] sm:$0x1] %vm268, 0.0
        $region36: #{tpu_custom_call.1} parent=27 // pred_fallthru
          _
        %v271 = vld [vmem:[#allocation2] sm:$0xff]
        %v272 = vld [vmem:[#allocation2 + $0x8] sm:$0xff]
        %v273 = vld [vmem:[#allocation2 + $0x10] sm:$0xff]
        %v274 = vld [vmem:[#allocation2 + $0x18] sm:$0xff]
        %v275 = vld [vmem:[#allocation2 + $0x20] sm:$0xff]
        %v276 = vld [vmem:[#allocation2 + $0x28] sm:$0xff]
        %v277 = vld [vmem:[#allocation2 + $0x30] sm:$0xff]
        %v278 = vld [vmem:[#allocation2 + $0x38] sm:$0xff]
        %v279 = vld [vmem:[#allocation2 + $0x40] sm:$0xff]
        %v280 = vld [vmem:[#allocation2 + $0x48] sm:$0xff]
        %v281 = vld [vmem:[#allocation2 + $0x50] sm:$0xff]
        %v282 = vld [vmem:[#allocation2 + $0x58] sm:$0xff]
        %v283 = vld [vmem:[#allocation2 + $0x60] sm:$0xff]
        %v284 = vld [vmem:[#allocation2 + $0x68] sm:$0xff]
        %v285 = vld [vmem:[#allocation2 + $0x70] sm:$0xff]
        %v286 = vld [vmem:[#allocation2 + $0x78] sm:$0xff]
        %v287 = vld [vmem:[%s229] sm:$0xf]
        %v288 = vld [vmem:[%s229 + $0x4] sm:$0xf]
        %v289 = vld [vmem:[%s229 + $0x8] sm:$0xf]
        %v290 = vld [vmem:[%s229 + $0xc] sm:$0xf]
        %v291 = vld [vmem:[%s229 + $0x10] sm:$0xf]
        %v292 = vld [vmem:[%s229 + $0x14] sm:$0xf]
        %v293 = vld [vmem:[%s229 + $0x18] sm:$0xf]
        %v294 = vld [vmem:[%s229 + $0x1c] sm:$0xf]
        %v295 = vld [vmem:[%s229 + $0x20] sm:$0xf]
        %v296 = vld [vmem:[%s229 + $0x24] sm:$0xf]
        %v297 = vld [vmem:[%s229 + $0x28] sm:$0xf]
        %v298 = vld [vmem:[%s229 + $0x2c] sm:$0xf]
        %v299 = vld [vmem:[%s229 + $0x30] sm:$0xf]
        %v300 = vld [vmem:[%s229 + $0x34] sm:$0xf]
        %v301 = vld [vmem:[%s229 + $0x38] sm:$0xf]
        %v302 = vld [vmem:[%s229 + $0x3c] sm:$0xf]
        %v303 = vld [vmem:[%s234] sm:$0x3]
        %v320 = vunpack.c.l.b16 %v287
        %v321 = vunpack.c.l.b16 %v288
        %v322 = vunpack.c.l.b16 %v289
        %v323 = vunpack.c.l.b16 %v290
        %v324 = vunpack.c.l.b16 %v291
        %v325 = vunpack.c.l.b16 %v292
        %v326 = vunpack.c.l.b16 %v293
        %v327 = vunpack.c.l.b16 %v294
        %v328 = vunpack.c.l.b16 %v295
        %v329 = vunpack.c.l.b16 %v296
        %v330 = vunpack.c.l.b16 %v297
        %v331 = vunpack.c.l.b16 %v298
        %v332 = vunpack.c.l.b16 %v299
        %v333 = vunpack.c.l.b16 %v300
        %v334 = vunpack.c.l.b16 %v301
        %v335 = vunpack.c.l.b16 %v302
        %v336 = vpack.c.b16 %v321, %v320
        %v337 = vpack.c.b16 %v323, %v322
        %v338 = vpack.c.b16 %v325, %v324
        %v339 = vpack.c.b16 %v327, %v326
        %v340 = vpack.c.b16 %v329, %v328
        %v341 = vpack.c.b16 %v331, %v330
        %v342 = vpack.c.b16 %v333, %v332
        %v343 = vpack.c.b16 %v335, %v334
        %vm344 = vcmask 31744
        %v346 = vsel %vm344, %v336, 0
        %v349 = vsel %vm344, %v337, 0
        %v352 = vsel %vm344, %v338, 0
        %v355 = vsel %vm344, %v339, 0
        %v358 = vsel %vm344, %v340, 0
        %v361 = vsel %vm344, %v341, 0
        %v364 = vsel %vm344, %v342, 0
        %v367 = vsel %vm344, %v343, 0
        %vm369 = vcmask 1041408
        %v371 = vsel %vm369, %v303, 0
        %373 = vmatpush.bf16.msra.mxu0 0
        %374 = vmatpush.bf16.msra.mxu0 0
        %375 = vmatpush.bf16.msra.mxu0 0
        %376 = vmatpush.bf16.msra.mxu0 0
        %377 = vmatpush.bf16.msra.mxu0 0
        %378 = vmatpush.bf16.msra.mxu0 0
        %379 = vmatpush.bf16.msra.mxu0 0
        %380 = vmatpush.bf16.msra.mxu0 %v371
        %381 = vmatmul.bf16.gmra.mxu0 %v346
        %v382 = vpop.f32.mrf.mxu0
        %v383 = vadd.f32 0.0, %v382
        %v384 = vpop.f32.mrf.mxu0
        %v385 = vadd.f32 0.0, %v384
        %386 = vmatmul.bf16.gmra.mxu0 %v349
        %v387 = vpop.f32.mrf.mxu0
        %v388 = vadd.f32 0.0, %v387
        %v389 = vpop.f32.mrf.mxu0
        %v390 = vadd.f32 0.0, %v389
        %391 = vmatmul.bf16.gmra.mxu0 %v352
        %v392 = vpop.f32.mrf.mxu0
        %v393 = vadd.f32 0.0, %v392
        %v394 = vpop.f32.mrf.mxu0
        %v395 = vadd.f32 0.0, %v394
        %396 = vmatmul.bf16.gmra.mxu0 %v355
        %v397 = vpop.f32.mrf.mxu0
        %v398 = vadd.f32 0.0, %v397
        %v399 = vpop.f32.mrf.mxu0
        %v400 = vadd.f32 0.0, %v399
        %401 = vmatmul.bf16.gmra.mxu0 %v358
        %v402 = vpop.f32.mrf.mxu0
        %v403 = vadd.f32 0.0, %v402
        %v404 = vpop.f32.mrf.mxu0
        %v405 = vadd.f32 0.0, %v404
        %406 = vmatmul.bf16.gmra.mxu0 %v361
        %v407 = vpop.f32.mrf.mxu0
        %v408 = vadd.f32 0.0, %v407
        %v409 = vpop.f32.mrf.mxu0
        %v410 = vadd.f32 0.0, %v409
        %411 = vmatmul.bf16.gmra.mxu0 %v364
        %v412 = vpop.f32.mrf.mxu0
        %v413 = vadd.f32 0.0, %v412
        %v414 = vpop.f32.mrf.mxu0
        %v415 = vadd.f32 0.0, %v414
        %416 = vmatmul.bf16.gmra.mxu0 %v367
        %v417 = vpop.f32.mrf.mxu0
        %v418 = vadd.f32 0.0, %v417
        %v419 = vpop.f32.mrf.mxu0
        %v420 = vadd.f32 0.0, %v419
        %421 = vdwg.mxu0
        %v422 = vadd.f32 %v271, %v383
        %v423 = vadd.f32 %v272, %v385
        %v424 = vadd.f32 %v273, %v388
        %v425 = vadd.f32 %v274, %v390
        %v426 = vadd.f32 %v275, %v393
        %v427 = vadd.f32 %v276, %v395
        %v428 = vadd.f32 %v277, %v398
        %v429 = vadd.f32 %v278, %v400
        %v430 = vadd.f32 %v279, %v403
        %v431 = vadd.f32 %v280, %v405
        %v432 = vadd.f32 %v281, %v408
        %v433 = vadd.f32 %v282, %v410
        %v434 = vadd.f32 %v283, %v413
        %v435 = vadd.f32 %v284, %v415
        %v436 = vadd.f32 %v285, %v418
        %v437 = vadd.f32 %v286, %v420
        %vm438 = vcmask 64512
        %439 = vst.msk [vmem:[#allocation2] sm:$0xff] %vm438, %v422
        %440 = vst.msk [vmem:[#allocation2 + $0x8] sm:$0xff] %vm438, %v423
        %441 = vst.msk [vmem:[#allocation2 + $0x10] sm:$0xff] %vm438, %v424
        %442 = vst.msk [vmem:[#allocation2 + $0x18] sm:$0xff] %vm438, %v425
        %443 = vst.msk [vmem:[#allocation2 + $0x20] sm:$0xff] %vm438, %v426
        %444 = vst.msk [vmem:[#allocation2 + $0x28] sm:$0xff] %vm438, %v427
        %445 = vst.msk [vmem:[#allocation2 + $0x30] sm:$0xff] %vm438, %v428
        %446 = vst.msk [vmem:[#allocation2 + $0x38] sm:$0xff] %vm438, %v429
        %447 = vst.msk [vmem:[#allocation2 + $0x40] sm:$0xff] %vm438, %v430
        %448 = vst.msk [vmem:[#allocation2 + $0x48] sm:$0xff] %vm438, %v431
        %449 = vst.msk [vmem:[#allocation2 + $0x50] sm:$0xff] %vm438, %v432
        %450 = vst.msk [vmem:[#allocation2 + $0x58] sm:$0xff] %vm438, %v433
        %451 = vst.msk [vmem:[#allocation2 + $0x60] sm:$0xff] %vm438, %v434
        %452 = vst.msk [vmem:[#allocation2 + $0x68] sm:$0xff] %vm438, %v435
        %453 = vst.msk [vmem:[#allocation2 + $0x70] sm:$0xff] %vm438, %v436
        %454 = vst.msk [vmem:[#allocation2 + $0x78] sm:$0xff] %vm438, %v437
        %p455 = scmp.eq.s32.totalorder %s23, 8
        // Predicated region
        $region37: #{tpu_custom_call.1} parent=27 // pred_check
          %p456 = pneg %p455
        $region38: #{tpu_custom_call.1} parent=27 // pred_check_branch
          %458 = sbr.rel (%p456) target = $region40
        $region39: #{tpu_custom_call.1} parent=27 // pred_region
          %v459 = vld [vmem:[#allocation2] sm:$0xff]
          %v460 = vld [vmem:[#allocation2 + $0x8] sm:$0xff]
          %v461 = vld [vmem:[#allocation2 + $0x10] sm:$0xff]
          %v462 = vld [vmem:[#allocation2 + $0x18] sm:$0xff]
          %v463 = vld [vmem:[#allocation2 + $0x20] sm:$0xff]
          %v464 = vld [vmem:[#allocation2 + $0x28] sm:$0xff]
          %v465 = vld [vmem:[#allocation2 + $0x30] sm:$0xff]
          %v466 = vld [vmem:[#allocation2 + $0x38] sm:$0xff]
          %v467 = vld [vmem:[#allocation2 + $0x40] sm:$0xff]
          %v468 = vld [vmem:[#allocation2 + $0x48] sm:$0xff]
          %v469 = vld [vmem:[#allocation2 + $0x50] sm:$0xff]
          %v470 = vld [vmem:[#allocation2 + $0x58] sm:$0xff]
          %v471 = vld [vmem:[#allocation2 + $0x60] sm:$0xff]
          %v472 = vld [vmem:[#allocation2 + $0x68] sm:$0xff]
          %v473 = vld [vmem:[#allocation2 + $0x70] sm:$0xff]
          %v474 = vld [vmem:[#allocation2 + $0x78] sm:$0xff]
          %475 = vst.msk [vmem:[%s239] sm:$0xff] %vm438, %v459
          %476 = vst.msk [vmem:[%s239 + $0x8] sm:$0xff] %vm438, %v460
          %477 = vst.msk [vmem:[%s239 + $0x10] sm:$0xff] %vm438, %v461
          %478 = vst.msk [vmem:[%s239 + $0x18] sm:$0xff] %vm438, %v462
          %479 = vst.msk [vmem:[%s239 + $0x20] sm:$0xff] %vm438, %v463
          %480 = vst.msk [vmem:[%s239 + $0x28] sm:$0xff] %vm438, %v464
          %481 = vst.msk [vmem:[%s239 + $0x30] sm:$0xff] %vm438, %v465
          %482 = vst.msk [vmem:[%s239 + $0x38] sm:$0xff] %vm438, %v466
          %483 = vst.msk [vmem:[%s239 + $0x40] sm:$0xff] %vm438, %v467
          %484 = vst.msk [vmem:[%s239 + $0x48] sm:$0xff] %vm438, %v468
          %485 = vst.msk [vmem:[%s239 + $0x50] sm:$0xff] %vm438, %v469
          %486 = vst.msk [vmem:[%s239 + $0x58] sm:$0xff] %vm438, %v470
          %487 = vst.msk [vmem:[%s239 + $0x60] sm:$0xff] %vm438, %v471
          %488 = vst.msk [vmem:[%s239 + $0x68] sm:$0xff] %vm438, %v472
          %489 = vst.msk [vmem:[%s239 + $0x70] sm:$0xff] %vm438, %v473
          %490 = vst.msk [vmem:[%s239 + $0x78] sm:$0xff] %vm438, %v474
          %s491 = smul.u32 %s22, 128
          %v492 = vlaneseq
          %v493 = vshrl.u32 %v492, 7
          %v494 = vadd.s32 %v493, 8
          %v495 = vadd.s32 %v493, 16
          %v496 = vadd.s32 %v493, 24
          %v497 = vadd.s32 %v493, 32
          %v498 = vadd.s32 %v493, 40
          %v499 = vadd.s32 %v493, 48
          %v500 = vadd.s32 %v493, 56
          %v501 = vadd.s32 %v493, 64
          %v502 = vadd.s32 %v493, 72
          %v503 = vadd.s32 %v493, 80
          %v504 = vadd.s32 %v493, 88
          %v505 = vadd.s32 %v493, 96
          %v506 = vadd.s32 %v493, 104
          %v507 = vadd.s32 %v493, 112
          %v508 = vadd.s32 %v493, 120
          %v509 = vstv %s491
          %v510 = vadd.s32 %v509, %v493
          %v511 = vadd.s32 %v509, %v494
          %v512 = vadd.s32 %v509, %v495
          %v513 = vadd.s32 %v509, %v496
          %v514 = vadd.s32 %v509, %v497
          %v515 = vadd.s32 %v509, %v498
          %v516 = vadd.s32 %v509, %v499
          %v517 = vadd.s32 %v509, %v500
          %v518 = vadd.s32 %v509, %v501
          %v519 = vadd.s32 %v509, %v502
          %v520 = vadd.s32 %v509, %v503
          %v521 = vadd.s32 %v509, %v504
          %v522 = vadd.s32 %v509, %v505
          %v523 = vadd.s32 %v509, %v506
          %v524 = vadd.s32 %v509, %v507
          %v525 = vadd.s32 %v509, %v508
          %vm526 = vcmp.lt.s32.totalorder %v510, 128
          %vm527 = vcmp.lt.s32.totalorder %v511, 128
          %vm528 = vcmp.lt.s32.totalorder %v512, 128
          %vm529 = vcmp.lt.s32.totalorder %v513, 128
          %vm530 = vcmp.lt.s32.totalorder %v514, 128
          %vm531 = vcmp.lt.s32.totalorder %v515, 128
          %vm532 = vcmp.lt.s32.totalorder %v516, 128
          %vm533 = vcmp.lt.s32.totalorder %v517, 128
          %vm534 = vcmp.lt.s32.totalorder %v518, 128
          %vm535 = vcmp.lt.s32.totalorder %v519, 128
          %vm536 = vcmp.lt.s32.totalorder %v520, 128
          %vm537 = vcmp.lt.s32.totalorder %v521, 128
          %vm538 = vcmp.lt.s32.totalorder %v522, 128
          %vm539 = vcmp.lt.s32.totalorder %v523, 128
          %vm540 = vcmp.lt.s32.totalorder %v524, 128
          %vm541 = vcmp.lt.s32.totalorder %v525, 128
          %v542 = vsel %vm526, %v459, 0.0
          %v543 = vsel %vm527, %v460, 0.0
          %v544 = vsel %vm528, %v461, 0.0
          %v545 = vsel %vm529, %v462, 0.0
          %v546 = vsel %vm530, %v463, 0.0
          %v547 = vsel %vm531, %v464, 0.0
          %v548 = vsel %vm532, %v465, 0.0
          %v549 = vsel %vm533, %v466, 0.0
          %v550 = vsel %vm534, %v467, 0.0
          %v551 = vsel %vm535, %v468, 0.0
          %v552 = vsel %vm536, %v469, 0.0
          %v553 = vsel %vm537, %v470, 0.0
          %v554 = vsel %vm538, %v471, 0.0
          %v555 = vsel %vm539, %v472, 0.0
          %v556 = vsel %vm540, %v473, 0.0
          %v557 = vsel %vm541, %v474, 0.0
          %v558 = vld [vmem:[#allocation3] sm:$0x1]
          %v559 = vsel %vm438, %v542, 0.0
          %v560 = vsel %vm438, %v543, 0.0
          %v561 = vadd.f32 %v559, %v560
          %v562 = vsel %vm438, %v544, 0.0
          %v563 = vadd.f32 %v561, %v562
          %v564 = vsel %vm438, %v545, 0.0
          %v565 = vadd.f32 %v563, %v564
          %v566 = vsel %vm438, %v546, 0.0
          %v567 = vadd.f32 %v565, %v566
          %v568 = vsel %vm438, %v547, 0.0
          %v569 = vadd.f32 %v567, %v568
          %v570 = vsel %vm438, %v548, 0.0
          %v571 = vadd.f32 %v569, %v570
          %v572 = vsel %vm438, %v549, 0.0
          %v573 = vadd.f32 %v571, %v572
          %v574 = vsel %vm438, %v550, 0.0
          %v575 = vadd.f32 %v573, %v574
          %v576 = vsel %vm438, %v551, 0.0
          %v577 = vadd.f32 %v575, %v576
          %v578 = vsel %vm438, %v552, 0.0
          %v579 = vadd.f32 %v577, %v578
          %v580 = vsel %vm438, %v553, 0.0
          %v581 = vadd.f32 %v579, %v580
          %v582 = vsel %vm438, %v554, 0.0
          %v583 = vadd.f32 %v581, %v582
          %v584 = vsel %vm438, %v555, 0.0
          %v585 = vadd.f32 %v583, %v584
          %v586 = vsel %vm438, %v556, 0.0
          %v587 = vadd.f32 %v585, %v586
          %v588 = vsel %vm438, %v557, 0.0
          %v589 = vadd.f32 %v587, %v588
          %v590 = vrot.slane %v589, 4
          %v591 = vadd.f32 %v589, %v590
          %v592 = vrot.slane %v591, 2
          %v593 = vadd.f32 %v591, %v592
          %v594 = vrot.slane %v593, 1
          %v595 = vadd.f32 %v593, %v594
          %v596 = vadd.f32 %v558, %v595
          %vm597 = vcmask 57344
          %598 = vst.msk [vmem:[#allocation3] sm:$0x1] %vm597, %v596
          %v599 = vld [vmem:[#allocation5] sm:$0x1]
          %v600 = vmul.f32 %v542, %v542
          %v601 = vmul.f32 %v543, %v543
          %v602 = vmul.f32 %v544, %v544
          %v603 = vmul.f32 %v545, %v545
          %v604 = vmul.f32 %v546, %v546
          %v605 = vmul.f32 %v547, %v547
          %v606 = vmul.f32 %v548, %v548
          %v607 = vmul.f32 %v549, %v549
          %v608 = vmul.f32 %v550, %v550
          %v609 = vmul.f32 %v551, %v551
          %v610 = vmul.f32 %v552, %v552
          %v611 = vmul.f32 %v553, %v553
          %v612 = vmul.f32 %v554, %v554
          %v613 = vmul.f32 %v555, %v555
          %v614 = vmul.f32 %v556, %v556
          %v615 = vmul.f32 %v557, %v557
          %v616 = vsel %vm438, %v600, 0.0
          %v617 = vsel %vm438, %v601, 0.0
          %v618 = vadd.f32 %v616, %v617
          %v619 = vsel %vm438, %v602, 0.0
          %v620 = vadd.f32 %v618, %v619
          %v621 = vsel %vm438, %v603, 0.0
          %v622 = vadd.f32 %v620, %v621
          %v623 = vsel %vm438, %v604, 0.0
          %v624 = vadd.f32 %v622, %v623
          %v625 = vsel %vm438, %v605, 0.0
          %v626 = vadd.f32 %v624, %v625
          %v627 = vsel %vm438, %v606, 0.0
          %v628 = vadd.f32 %v626, %v627
          %v629 = vsel %vm438, %v607, 0.0
          %v630 = vadd.f32 %v628, %v629
          %v631 = vsel %vm438, %v608, 0.0
          %v632 = vadd.f32 %v630, %v631
          %v633 = vsel %vm438, %v609, 0.0
          %v634 = vadd.f32 %v632, %v633
          %v635 = vsel %vm438, %v610, 0.0
          %v636 = vadd.f32 %v634, %v635
          %v637 = vsel %vm438, %v611, 0.0
          %v638 = vadd.f32 %v636, %v637
          %v639 = vsel %vm438, %v612, 0.0
          %v640 = vadd.f32 %v638, %v639
          %v641 = vsel %vm438, %v613, 0.0
          %v642 = vadd.f32 %v640, %v641
          %v643 = vsel %vm438, %v614, 0.0
          %v644 = vadd.f32 %v642, %v643
          %v645 = vsel %vm438, %v615, 0.0
          %v646 = vadd.f32 %v644, %v645
          %v647 = vrot.slane %v646, 4
          %v648 = vadd.f32 %v646, %v647
          %v649 = vrot.slane %v648, 2
          %v650 = vadd.f32 %v648, %v649
          %v651 = vrot.slane %v650, 1
          %v652 = vadd.f32 %v650, %v651
          %v653 = vadd.f32 %v599, %v652
          %654 = vst.msk [vmem:[#allocation5] sm:$0x1] %vm597, %v653
        $region40: #{tpu_custom_call.1} parent=27 // pred_fallthru
          _
        %s655 = smul.u32 16, %s22
        %p656 = scmp.lt.s32.totalorder %s655, 15
        %s657 = scalar_select %p656, %s655, 15
        %s658 = smul.addr %s657, 8
        %s659 = scalar_lea.vmem %s2, %s658
        // Predicated region
        $region41: #{tpu_custom_call.1} parent=27 // pred_check
          %p660 = pneg %p102
        $region42: #{tpu_custom_call.1} parent=27 // pred_check_branch
          %662 = sbr.rel (%p660) target = $region44
        $region43: #{tpu_custom_call.1} parent=27 // pred_region
          %s663 = smul.u32 16, %s22
        $region44: #{tpu_custom_call.1} parent=27 // pred_fallthru
          _
        // Predicated region
        $region45: #{tpu_custom_call.1} parent=27 // pred_check
          %p664 = pneg %p123
        $region46: #{tpu_custom_call.1} parent=27 // pred_check_branch
          %666 = sbr.rel (%p664) target = $region48
        $region47: #{tpu_custom_call.1} parent=27 // pred_region
          %668 = vsyncadd [#allocation4], 0
          %s670 = sshll.u32 [#allocation3], 4
          %s671 = int_to_ptr.vmem [resolvable:$true] %s670
          %s672 = sshll.u32 %s3, 4
          %s673 = int_to_ptr.hbm [resolvable:$true] %s672
          %675 = dma.vmem_to_hbm [thread:$0]  %s671, 16, %s673, [#allocation4]
        $region48: #{tpu_custom_call.1} parent=27 // pred_fallthru
          _
        // Predicated region
        $region49: #{tpu_custom_call.1} parent=27 // pred_check
          %p676 = pneg %p144
        $region50: #{tpu_custom_call.1} parent=27 // pred_check_branch
          %678 = sbr.rel (%p676) target = $region52
        $region51: #{tpu_custom_call.1} parent=27 // pred_region
          %680 = vsyncadd [#allocation6], 0
          %s682 = sshll.u32 [#allocation5], 4
          %s683 = int_to_ptr.vmem [resolvable:$true] %s682
          %s684 = sshll.u32 %s4, 4
          %s685 = int_to_ptr.hbm [resolvable:$true] %s684
          %687 = dma.vmem_to_hbm [thread:$0]  %s683, 16, %s685, [#allocation6]
        $region52: #{tpu_custom_call.1} parent=27 // pred_fallthru
          _
        // Predicated region
        $region53: #{tpu_custom_call.1} parent=27 // pred_check
          %p688 = pneg %p102
        $region54: #{tpu_custom_call.1} parent=27 // pred_check_branch
          %690 = sbr.rel (%p688) target = $region56
        $region55: #{tpu_custom_call.1} parent=27 // pred_region
          %s691 = smul.u32 16, %s22
          %p692 = scmp.lt.s32.totalorder %s691, 15
          %s693 = scalar_select %p692, %s691, 15
          %s694 = smul.addr %s693, 8
          %s695 = scalar_lea.vmem %s2, %s694
        $region56: #{tpu_custom_call.1} parent=27 // pred_fallthru
          _
        // Predicated region
        $region57: #{tpu_custom_call.1} parent=27 // pred_check
          %p696 = pneg %p123
        $region58: #{tpu_custom_call.1} parent=27 // pred_check_branch
          %698 = sbr.rel (%p696) target = $region60
        $region59: #{tpu_custom_call.1} parent=27 // pred_region
          %700 = dma.done [#allocation4], 16
        $region60: #{tpu_custom_call.1} parent=27 // pred_fallthru
          _
        // Predicated region
        $region61: #{tpu_custom_call.1} parent=27 // pred_check
          %p701 = pneg %p144
        $region62: #{tpu_custom_call.1} parent=27 // pred_check_branch
          %703 = sbr.rel (%p701) target = $region64
        $region63: #{tpu_custom_call.1} parent=27 // pred_region
          %705 = dma.done [#allocation6], 16
        $region64: #{tpu_custom_call.1} parent=27 // pred_fallthru
          _
      $region28: #{tpu_custom_call.1} parent=5 // pred_fallthru
        _
      %p706 = scmp.le.s32.totalorder 2, %s13
      // Predicated region
      $region65: #{tpu_custom_call.1} parent=5 // pred_check
        %p707 = pneg %p706
      $region66: #{tpu_custom_call.1} parent=5 // pred_check_branch
        %709 = sbr.rel (%p707) target = $region68
      $region67: #{tpu_custom_call.1} parent=5 // pred_region
        %s710 = ssub.s32 %s13, 2
      $region68: #{tpu_custom_call.1} parent=5 // pred_fallthru
        _
    $region6: #{tpu_custom_call.1} parent=1 // loop_footer
      %s17 = sadd.s32 1, %s13
    $region7: #{tpu_custom_call.1} parent=1 // loop_footer_branch
      %12 = sbr.rel target = $region3
    $region8: #{tpu_custom_call.1} parent=1 // loop_exit
      _
    %711 = vsyncpa [#allocation4], 1
    %s712 = scalar_lea.sflag [#allocation4], 1
    %713 = vsyncpa %s712, 1
    %714 = vsyncpa [#allocation6], 1

</llo_original>
